<compile_context>
chip_gen: v7x
topology: tpu7x:2x2x1
jax: 0.10.0
libtpu: 0.0.40
codegen_flags: <defaults>
</compile_context>

<pallas_src>
import jax
import jax.numpy as jnp
from jax.experimental import pallas as pl
from jax.experimental.pallas import tpu as pltpu

_LANES = 128


def _pll_kernel(logh_ref, ev_ref, tri_ref, lrow_ref, out_ref,
                m_ref, s_ref, num_ref, den_ref):
    t = pl.program_id(0)

    @pl.when(t == 0)
    def _init():
        m_ref[...] = jnp.full_like(m_ref, -jnp.inf)
        s_ref[...] = jnp.zeros_like(s_ref)
        num_ref[...] = jnp.zeros_like(num_ref)
        den_ref[...] = jnp.zeros_like(den_ref)

    x = logh_ref[...]                       # (TR, 128) f32, sublane-dense
    ev = ev_ref[...]                        # (TR, 128) f32
    nl = x.shape[1]

    # --- stable running log-sum-exp carry (across tiles) ---------------------
    m_old = m_ref[...]                      # (1, 1) running max
    s_old = s_ref[...]                      # (1, 1) sum of exp(x - m_old) so far
    m_new = jnp.maximum(m_old, jnp.max(x))  # (1, 1)
    s_carry = s_old * jnp.exp(m_old - m_new)   # rescale old sum (0 on step 0)

    e = jnp.exp(x - m_new)                  # (TR, 128), scaled -> no overflow

    # --- two-level inclusive prefix sum over the flattened tile --------------
    # intra-row (lane) cumsum via constant upper-triangular matmul (MXU)
    lane_cum = jnp.dot(e, tri_ref[...], preferred_element_type=jnp.float32)
    # exclusive prefix of the row totals via strictly-lower-triangular matmul
    row_part = jnp.dot(lrow_ref[...], lane_cum,
                       preferred_element_type=jnp.float32)
    row_excl = row_part[:, nl - 1:nl]       # (TR, 1): sum of all previous rows

    cum = s_carry + row_excl + lane_cum     # (TR, 128) scaled running cumsum
    log_cum = jnp.log(cum) + m_new          # stable log(cumsum(exp(log_h)))

    diff = x - log_cum
    num_ref[...] = num_ref[...] + jnp.sum(jnp.where(ev > 0.0, diff, 0.0))
    den_ref[...] = den_ref[...] + jnp.sum(ev)

    # --- update the carry for the next tile ----------------------------------
    s_ref[...] = s_carry + jnp.sum(lane_cum[:, nl - 1:nl])
    m_ref[...] = m_new

    @pl.when(t == pl.num_programs(0) - 1)
    def _finalize():
        # NOTE: den == 0 (all-censored batch) yields NaN, matching the
        # PyTorch reference semantics.
        out_ref[...] = -(num_ref[...] / den_ref[...])


def partial_log_likelihood(logits, fail_indicator, *, max_tile_rows=256):
    """Pallas TPU implementation of the DeepSurv partial log-likelihood loss."""
    log_h = jnp.reshape(logits, (-1,)).astype(jnp.float32)
    events = jnp.reshape(fail_indicator, (-1,)).astype(jnp.float32)
    n = log_h.shape[0]

    rows = max(1, -(-n // _LANES))
    tile_rows = min(max_tile_rows, ((rows + 7) // 8) * 8)
    num_tiles = -(-rows // tile_rows)
    total_rows = num_tiles * tile_rows
    n_pad = total_rows * _LANES

    # Pad the tail (logits -> 0, events -> 0). Padding sits after every real
    # sample in row-major scan order, so it never perturbs a real sample's
    # cumulative sum, and events == 0 drops it from both reductions.
    log_h_p = jnp.pad(log_h, (0, n_pad - n)).reshape(total_rows, _LANES)
    events_p = jnp.pad(events, (0, n_pad - n)).reshape(total_rows, _LANES)

    # Constant prefix-sum matrices, built once outside the grid loop and kept
    # resident in VMEM (constant index_map -> DMA'd a single time).
    li = jax.lax.broadcasted_iota(jnp.int32, (_LANES, _LANES), 0)
    lj = jax.lax.broadcasted_iota(jnp.int32, (_LANES, _LANES), 1)
    tri = (li <= lj).astype(jnp.float32)                 # inclusive, lane axis
    ri = jax.lax.broadcasted_iota(jnp.int32, (tile_rows, tile_rows), 0)
    rj = jax.lax.broadcasted_iota(jnp.int32, (tile_rows, tile_rows), 1)
    lrow = (rj < ri).astype(jnp.float32)                 # strict, row axis

    out = pl.pallas_call(
        _pll_kernel,
        out_shape=jax.ShapeDtypeStruct((1, 1), jnp.float32),
        grid=(num_tiles,),
        in_specs=[
            pl.BlockSpec((tile_rows, _LANES), lambda t: (t, 0)),
            pl.BlockSpec((tile_rows, _LANES), lambda t: (t, 0)),
            pl.BlockSpec((_LANES, _LANES), lambda t: (0, 0)),
            pl.BlockSpec((tile_rows, tile_rows), lambda t: (0, 0)),
        ],
        out_specs=pl.BlockSpec((1, 1), lambda t: (0, 0)),
        scratch_shapes=[
            pltpu.VMEM((1, 1), jnp.float32),   # running max
            pltpu.VMEM((1, 1), jnp.float32),   # running (rescaled) exp-sum
            pltpu.VMEM((1, 1), jnp.float32),   # numerator accumulator
            pltpu.VMEM((1, 1), jnp.float32),   # denominator accumulator
        ],
        compiler_params=pltpu.CompilerParams(
            dimension_semantics=("arbitrary",)),
    )(log_h_p, events_p, tri, lrow)
    return out[0, 0]


def _reference(logits, fail_indicator):
    log_h = jnp.reshape(logits, (-1,)).astype(jnp.float32)
    ev = jnp.reshape(fail_indicator, (-1,)).astype(jnp.float32)
    log_cumsum = jnp.log(jnp.cumsum(jnp.exp(log_h)))
    return -jnp.sum((log_h - log_cumsum) * ev) / jnp.sum(ev)


if __name__ == "__main__":
    key = jax.random.PRNGKey(0)
    k1, k2, k3, k4 = jax.random.split(key, 4)

    # Case 1: tiny batch (single tile), shaped like raw model logits (batch, 1).
    batch = 8
    logits = jax.random.normal(k1, (batch, 1), dtype=jnp.float32)
    fail = (jax.random.uniform(k2, (batch,)) > 0.3).astype(jnp.float32)
    fail = fail.at[0].set(1.0)          # guarantee at least one event
    loss = jax.block_until_ready(partial_log_likelihood(logits, fail))
    ref = _reference(logits, fail)
    assert jnp.allclose(loss, ref, rtol=1e-5, atol=1e-5), (loss, ref)

    # Case 2: larger batch forced through multiple grid tiles (exercises the
    # cross-tile running carry / streaming path).
    n2 = 1100
    logits2 = jax.random.normal(k3, (n2, 1), dtype=jnp.float32)
    fail2 = (jax.random.uniform(k4, (n2,)) > 0.4).astype(jnp.float32)
    fail2 = fail2.at[0].set(1.0)
    loss2 = jax.block_until_ready(
        partial_log_likelihood(logits2, fail2, max_tile_rows=8))
    ref2 = _reference(logits2, fail2)
    assert jnp.allclose(loss2, ref2, rtol=1e-4, atol=1e-4), (loss2, ref2)

    print("KERNEL_OK")
</pallas_src>

<mosaic_0001>
module attributes {stable_mosaic.version = 11 : i64} {
  func.func @_pll_kernel(%arg0: i32, %arg1: memref<8x128xf32, #tpu.memory_space<vmem>>, %arg2: memref<8x128xf32, #tpu.memory_space<vmem>>, %arg3: memref<128x128xf32, #tpu.memory_space<vmem>>, %arg4: memref<8x8xf32, #tpu.memory_space<vmem>>, %arg5: memref<1x1xf32, #tpu.memory_space<vmem>>, %arg6: memref<1x1xf32, #tpu.memory_space<vmem>>, %arg7: memref<1x1xf32, #tpu.memory_space<vmem>>, %arg8: memref<1x1xf32, #tpu.memory_space<vmem>>, %arg9: memref<1x1xf32, #tpu.memory_space<vmem>>) attributes {dimension_semantics = [#tpu.dimension_semantics<arbitrary>], iteration_bounds = array<i64: 1>, scalar_prefetch = 0 : i64, scratch_operands = 4 : i64, tpu.core_type = #tpu.core_type<tc>, window_params = [{transform_indices = @transform_0, window_bounds = array<i64: 8, 128>}, {transform_indices = @transform_1, window_bounds = array<i64: 8, 128>}, {pipeline_mode = #tpu.pipeline_mode<synchronous>, transform_indices = @transform_2, window_bounds = array<i64: 128, 128>}, {pipeline_mode = #tpu.pipeline_mode<synchronous>, transform_indices = @transform_3, window_bounds = array<i64: 8, 8>}, {pipeline_mode = #tpu.pipeline_mode<synchronous>, transform_indices = @transform_4, window_bounds = array<i64: 1, 1>}]} {
    %c0_i32 = arith.constant 0 : i32
    %0 = arith.cmpi eq, %arg0, %c0_i32 : i32
    %1 = arith.extui %0 : i1 to i32
    %c0_i32_0 = arith.constant 0 : i32
    %2 = arith.cmpi ne, %1, %c0_i32_0 : i32
    scf.if %2 {
      %cst_33 = arith.constant 0xFF800000 : f32
      %64 = vector.broadcast %cst_33 : f32 to vector<1x1xf32>
      %c0_34 = arith.constant 0 : index
      %c0_35 = arith.constant 0 : index
      %65 = vector.load %arg6[%c0_34, %c0_35] : memref<1x1xf32, #tpu.memory_space<vmem>>, vector<1x1xf32>
      tpu.vector_store %arg6[%c0_34, %c0_35], %64 {strides = array<i32>} : memref<1x1xf32, #tpu.memory_space<vmem>>, vector<1x1xf32>,
      %cst_36 = arith.constant 0.000000e+00 : f32
      %66 = vector.broadcast %cst_36 : f32 to vector<1x1xf32>
      %c0_37 = arith.constant 0 : index
      %c0_38 = arith.constant 0 : index
      %67 = vector.load %arg7[%c0_37, %c0_38] : memref<1x1xf32, #tpu.memory_space<vmem>>, vector<1x1xf32>
      tpu.vector_store %arg7[%c0_37, %c0_38], %66 {strides = array<i32>} : memref<1x1xf32, #tpu.memory_space<vmem>>, vector<1x1xf32>,
      %cst_39 = arith.constant 0.000000e+00 : f32
      %68 = vector.broadcast %cst_39 : f32 to vector<1x1xf32>
      %c0_40 = arith.constant 0 : index
      %c0_41 = arith.constant 0 : index
      %69 = vector.load %arg8[%c0_40, %c0_41] : memref<1x1xf32, #tpu.memory_space<vmem>>, vector<1x1xf32>
      tpu.vector_store %arg8[%c0_40, %c0_41], %68 {strides = array<i32>} : memref<1x1xf32, #tpu.memory_space<vmem>>, vector<1x1xf32>,
      %cst_42 = arith.constant 0.000000e+00 : f32
      %70 = vector.broadcast %cst_42 : f32 to vector<1x1xf32>
      %c0_43 = arith.constant 0 : index
      %c0_44 = arith.constant 0 : index
      %71 = vector.load %arg9[%c0_43, %c0_44] : memref<1x1xf32, #tpu.memory_space<vmem>>, vector<1x1xf32>
      tpu.vector_store %arg9[%c0_43, %c0_44], %70 {strides = array<i32>} : memref<1x1xf32, #tpu.memory_space<vmem>>, vector<1x1xf32>,
    } else {
    }
    %c0 = arith.constant 0 : index
    %c0_1 = arith.constant 0 : index
    %3 = vector.load %arg1[%c0, %c0_1] : memref<8x128xf32, #tpu.memory_space<vmem>>, vector<8x128xf32>
    %c0_2 = arith.constant 0 : index
    %c0_3 = arith.constant 0 : index
    %4 = vector.load %arg2[%c0_2, %c0_3] : memref<8x128xf32, #tpu.memory_space<vmem>>, vector<8x128xf32>
    %c0_4 = arith.constant 0 : index
    %c0_5 = arith.constant 0 : index
    %5 = vector.load %arg6[%c0_4, %c0_5] : memref<1x1xf32, #tpu.memory_space<vmem>>, vector<1x1xf32>
    %c0_6 = arith.constant 0 : index
    %c0_7 = arith.constant 0 : index
    %6 = vector.load %arg7[%c0_6, %c0_7] : memref<1x1xf32, #tpu.memory_space<vmem>>, vector<1x1xf32>
    %7 = vector.shape_cast %3 : vector<8x128xf32> to vector<1x8x128xf32>
    %cst = arith.constant dense<0xFF800000> : vector<1xf32>
    %8 = vector.multi_reduction <maximumf>, %7, %cst [1, 2] : vector<1x8x128xf32> to vector<1xf32>
    %9 = vector.shape_cast %8 : vector<1xf32> to vector<1x1x1xf32>
    %10 = vector.extract %9[0, 0, 0] : f32 from vector<1x1x1xf32>
    %11 = vector.broadcast %10 : f32 to vector<1x1xf32>
    %12 = arith.maximumf %5, %11 : vector<1x1xf32>
    %13 = arith.subf %5, %12 : vector<1x1xf32>
    %14 = math.exp %13 : vector<1x1xf32>
    %15 = arith.mulf %6, %14 : vector<1x1xf32>
    %16 = vector.broadcast %12 : vector<1x1xf32> to vector<8x128xf32>
    %17 = arith.subf %3, %16 : vector<8x128xf32>
    %18 = math.exp %17 : vector<8x128xf32>
    %c0_8 = arith.constant 0 : index
    %c0_9 = arith.constant 0 : index
    %19 = vector.load %arg3[%c0_8, %c0_9] : memref<128x128xf32, #tpu.memory_space<vmem>>, vector<128x128xf32>
    %cst_10 = arith.constant dense<0.000000e+00> : vector<8x128xf32>
    %20 = tpu.matmul %18, %19, %cst_10 {dimension_numbers = #tpu.dot_dimension_numbers<[1], [0], [0], [1], [0, 0, 1, 1], [], []>} : vector<8x128xf32>, vector<128x128xf32>, vector<8x128xf32> -> vector<8x128xf32>
    %c0_11 = arith.constant 0 : index
    %c0_12 = arith.constant 0 : index
    %21 = vector.load %arg4[%c0_11, %c0_12] : memref<8x8xf32, #tpu.memory_space<vmem>>, vector<8x8xf32>
    %cst_13 = arith.constant dense<0.000000e+00> : vector<8x128xf32>
    %22 = tpu.matmul %21, %20, %cst_13 {dimension_numbers = #tpu.dot_dimension_numbers<[1], [0], [0], [1], [0, 0, 1, 1], [], []>} : vector<8x8xf32>, vector<8x128xf32>, vector<8x128xf32> -> vector<8x128xf32>
    %23 = vector.extract_strided_slice %22 {offsets = [0, 127], sizes = [8, 1], strides = [1, 1]} : vector<8x128xf32> to vector<8x1xf32>
    %24 = vector.broadcast %15 : vector<1x1xf32> to vector<8x1xf32>
    %25 = arith.addf %24, %23 : vector<8x1xf32>
    %26 = vector.broadcast %25 : vector<8x1xf32> to vector<8x128xf32>
    %27 = arith.addf %26, %20 : vector<8x128xf32>
    %28 = math.log %27 : vector<8x128xf32>
    %29 = vector.broadcast %12 : vector<1x1xf32> to vector<8x128xf32>
    %30 = arith.addf %28, %29 : vector<8x128xf32>
    %31 = arith.subf %3, %30 : vector<8x128xf32>
    %c0_14 = arith.constant 0 : index
    %c0_15 = arith.constant 0 : index
    %32 = vector.load %arg8[%c0_14, %c0_15] : memref<1x1xf32, #tpu.memory_space<vmem>>, vector<1x1xf32>
    %cst_16 = arith.constant 0.000000e+00 : f32
    %33 = vector.broadcast %cst_16 : f32 to vector<8x128xf32>
    %34 = arith.cmpf ogt, %4, %33 : vector<8x128xf32>
    %cst_17 = arith.constant 0.000000e+00 : f32
    %35 = vector.broadcast %cst_17 : f32 to vector<8x128xf32>
    %36 = arith.select %34, %31, %35 : vector<8x128xi1>, vector<8x128xf32>
    %37 = vector.shape_cast %36 : vector<8x128xf32> to vector<1x8x128xf32>
    %cst_18 = arith.constant dense<0.000000e+00> : vector<1xf32>
    %38 = vector.multi_reduction <add>, %37, %cst_18 [1, 2] : vector<1x8x128xf32> to vector<1xf32>
    %39 = vector.shape_cast %38 : vector<1xf32> to vector<1x1x1xf32>
    %40 = vector.extract %39[0, 0, 0] : f32 from vector<1x1x1xf32>
    %41 = vector.broadcast %40 : f32 to vector<1x1xf32>
    %42 = arith.addf %32, %41 : vector<1x1xf32>
    %c0_19 = arith.constant 0 : index
    %c0_20 = arith.constant 0 : index
    %43 = vector.load %arg8[%c0_19, %c0_20] : memref<1x1xf32, #tpu.memory_space<vmem>>, vector<1x1xf32>
    tpu.vector_store %arg8[%c0_19, %c0_20], %42 {strides = array<i32>} : memref<1x1xf32, #tpu.memory_space<vmem>>, vector<1x1xf32>,
    %c0_21 = arith.constant 0 : index
    %c0_22 = arith.constant 0 : index
    %44 = vector.load %arg9[%c0_21, %c0_22] : memref<1x1xf32, #tpu.memory_space<vmem>>, vector<1x1xf32>
    %45 = vector.shape_cast %4 : vector<8x128xf32> to vector<1x8x128xf32>
    %cst_23 = arith.constant dense<0.000000e+00> : vector<1xf32>
    %46 = vector.multi_reduction <add>, %45, %cst_23 [1, 2] : vector<1x8x128xf32> to vector<1xf32>
    %47 = vector.shape_cast %46 : vector<1xf32> to vector<1x1x1xf32>
    %48 = vector.extract %47[0, 0, 0] : f32 from vector<1x1x1xf32>
    %49 = vector.broadcast %48 : f32 to vector<1x1xf32>
    %50 = arith.addf %44, %49 : vector<1x1xf32>
    %c0_24 = arith.constant 0 : index
    %c0_25 = arith.constant 0 : index
    %51 = vector.load %arg9[%c0_24, %c0_25] : memref<1x1xf32, #tpu.memory_space<vmem>>, vector<1x1xf32>
    tpu.vector_store %arg9[%c0_24, %c0_25], %50 {strides = array<i32>} : memref<1x1xf32, #tpu.memory_space<vmem>>, vector<1x1xf32>,
    %52 = vector.extract_strided_slice %20 {offsets = [0, 127], sizes = [8, 1], strides = [1, 1]} : vector<8x128xf32> to vector<8x1xf32>
    %53 = vector.shape_cast %52 : vector<8x1xf32> to vector<1x8x1xf32>
    %cst_26 = arith.constant dense<0.000000e+00> : vector<1xf32>
    %54 = vector.multi_reduction <add>, %53, %cst_26 [1, 2] : vector<1x8x1xf32> to vector<1xf32>
    %55 = vector.shape_cast %54 : vector<1xf32> to vector<1x1x1xf32>
    %56 = vector.extract %55[0, 0, 0] : f32 from vector<1x1x1xf32>
    %57 = vector.broadcast %56 : f32 to vector<1x1xf32>
    %58 = arith.addf %15, %57 : vector<1x1xf32>
    %c0_27 = arith.constant 0 : index
    %c0_28 = arith.constant 0 : index
    %59 = vector.load %arg7[%c0_27, %c0_28] : memref<1x1xf32, #tpu.memory_space<vmem>>, vector<1x1xf32>
    tpu.vector_store %arg7[%c0_27, %c0_28], %58 {strides = array<i32>} : memref<1x1xf32, #tpu.memory_space<vmem>>, vector<1x1xf32>,
    %c0_29 = arith.constant 0 : index
    %c0_30 = arith.constant 0 : index
    %60 = vector.load %arg6[%c0_29, %c0_30] : memref<1x1xf32, #tpu.memory_space<vmem>>, vector<1x1xf32>
    tpu.vector_store %arg6[%c0_29, %c0_30], %12 {strides = array<i32>} : memref<1x1xf32, #tpu.memory_space<vmem>>, vector<1x1xf32>,
    %c0_i32_31 = arith.constant 0 : i32
    %61 = arith.cmpi eq, %arg0, %c0_i32_31 : i32
    %62 = arith.extui %61 : i1 to i32
    %c0_i32_32 = arith.constant 0 : i32
    %63 = arith.cmpi ne, %62, %c0_i32_32 : i32
    scf.if %63 {
      %c0_33 = arith.constant 0 : index
      %c0_34 = arith.constant 0 : index
      %64 = vector.load %arg8[%c0_33, %c0_34] : memref<1x1xf32, #tpu.memory_space<vmem>>, vector<1x1xf32>
      %c0_35 = arith.constant 0 : index
      %c0_36 = arith.constant 0 : index
      %65 = vector.load %arg9[%c0_35, %c0_36] : memref<1x1xf32, #tpu.memory_space<vmem>>, vector<1x1xf32>
      %66 = arith.divf %64, %65 : vector<1x1xf32>
      %cst_37 = arith.constant 0.000000e+00 : f32
      %67 = vector.broadcast %cst_37 : f32 to vector<1x1xf32>
      %68 = arith.subf %67, %66 : vector<1x1xf32>
      %c0_38 = arith.constant 0 : index
      %c0_39 = arith.constant 0 : index
      %69 = vector.load %arg5[%c0_38, %c0_39] : memref<1x1xf32, #tpu.memory_space<vmem>>, vector<1x1xf32>
      tpu.vector_store %arg5[%c0_38, %c0_39], %68 {strides = array<i32>} : memref<1x1xf32, #tpu.memory_space<vmem>>, vector<1x1xf32>,
    } else {
    }
    return
  }
  func.func @transform_0(%arg0: i32) -> (i32, i32) {
    %c0_i32 = arith.constant 0 : i32
    %c0_i32_0 = arith.constant 0 : i32
    return %arg0, %c0_i32 : i32, i32
  }
  func.func @transform_1(%arg0: i32) -> (i32, i32) {
    %c0_i32 = arith.constant 0 : i32
    %c0_i32_0 = arith.constant 0 : i32
    return %arg0, %c0_i32 : i32, i32
  }
  func.func @transform_2(%arg0: i32) -> (i32, i32) {
    %c0_i32 = arith.constant 0 : i32
    %c0_i32_0 = arith.constant 0 : i32
    %c0_i32_1 = arith.constant 0 : i32
    return %c0_i32, %c0_i32_0 : i32, i32
  }
  func.func @transform_3(%arg0: i32) -> (i32, i32) {
    %c0_i32 = arith.constant 0 : i32
    %c0_i32_0 = arith.constant 0 : i32
    %c0_i32_1 = arith.constant 0 : i32
    return %c0_i32, %c0_i32_0 : i32, i32
  }
  func.func @transform_4(%arg0: i32) -> (i32, i32) {
    %c0_i32 = arith.constant 0 : i32
    %c0_i32_0 = arith.constant 0 : i32
    %c0_i32_1 = arith.constant 0 : i32
    return %c0_i32, %c0_i32_0 : i32, i32
  }
}

</mosaic_0001>

<llo_original>
// kernel: tpu_custom_call.1
$region0: #{tpu_custom_call.1}
  #allocation0 [shape = 'u32[]', space=smem, size = 0x4, offset = 0x4, fixed_abs, tag = 'smem constant byte address 0x4 - core index']
  #allocation1 [shape = 'u32[144,128]{1,0:T(1,128)}', space=vmem, size = 0x12000, scoped, tag = 'internal scratch']
  #allocation2 [shape = 'f32[1,1]{1,0:T(1,128)}', space=vmem, size = 0x200, scoped, tag = 'scratch operand']
  #allocation3 [shape = 'f32[1,1]{1,0:T(1,128)}', space=vmem, size = 0x200, scoped, tag = 'scratch operand']
  #allocation4 [shape = 'f32[1,1]{1,0:T(1,128)}', space=vmem, size = 0x200, scoped, tag = 'scratch operand']
  #allocation5 [shape = 'f32[1,1]{1,0:T(1,128)}', space=vmem, size = 0x200, scoped, tag = 'scratch operand']
  %s0 = inlined_call_operand.hbm [shape: f32[8,128], index: 0, kind: input, shape index: {}]
  %s1 = inlined_call_operand.hbm [shape: f32[8,128], index: 1, kind: input, shape index: {}]
  %s2 = inlined_call_operand.hbm [shape: f32[128,128], index: 2, kind: input, shape index: {}]
  %s3 = inlined_call_operand.vmem [shape: f32[8,8], index: 3, kind: input, shape index: {}]
  %s4 = inlined_call_operand.hbm [shape: f32[1,1], index: 4, kind: output, shape index: {}]
  %s5 = sld [smem:[#allocation0]]
  $region46: #{tpu_custom_call.1} parent=0
    _
  %s7 = ssub.s32 1, %s5
  %s8 = scalar_select 0, %s7, %s5
  $region1: #{tpu_custom_call.1} parent=0
    #allocation6 [shape = 'u8[4096]{0}', space=vmem, size = 0x1000, scoped, tag = 'input window, operand 0, single buffered']
    #allocation7 [shape = 's32[1]{0}', space=sflag, size = 0x4, scoped, tag = 'scoped memory for tpu_custom_call.1']
    #allocation8 [shape = 's32[1]{0}', space=sflag, size = 0x4, scoped, tag = 'scoped memory for tpu_custom_call.1']
    #allocation9 [shape = 'u8[4096]{0}', space=vmem, size = 0x1000, scoped, tag = 'input window, operand 1, single buffered']
    #allocation10 [shape = 's32[1]{0}', space=sflag, size = 0x4, scoped, tag = 'scoped memory for tpu_custom_call.1']
    #allocation11 [shape = 'u8[65536]{0}', space=vmem, size = 0x10000, scoped, tag = 'input window, operand 2, single buffered']
    #allocation12 [shape = 'u8[512]{0}', space=vmem, size = 0x400, scoped, tag = 'output window, operand 0, single buffered']
    %9 = vsyncpa [#allocation7], 0
    %10 = vsyncpa [#allocation10], 0
    %11 = vsyncpa [#allocation8], 0
    // Predicated region
    $region2: #{tpu_custom_call.1} parent=1 // pred_check
      _
    $region3: #{tpu_custom_call.1} parent=1 // pred_check_branch
      %13 = sbr.rel (0) target = $region5
    $region4: #{tpu_custom_call.1} parent=1 // pred_region
      %s15 = ssub.s32 128, 128
      %16 = vsyncadd [#allocation7], %s15
      %s18 = sshll.u32 [#allocation6], 4
      %s19 = int_to_ptr.vmem [resolvable:$true] %s18
      %21 = dma.hbm_to_vmem [thread:$0]  %s0, 128, %s19, [#allocation7]
    $region5: #{tpu_custom_call.1} parent=1 // pred_fallthru
      _
    // Predicated region
    $region6: #{tpu_custom_call.1} parent=1 // pred_check
      _
    $region7: #{tpu_custom_call.1} parent=1 // pred_check_branch
      %23 = sbr.rel (0) target = $region9
    $region8: #{tpu_custom_call.1} parent=1 // pred_region
      %s25 = ssub.s32 128, 128
      %26 = vsyncadd [#allocation10], %s25
      %s28 = sshll.u32 [#allocation9], 4
      %s29 = int_to_ptr.vmem [resolvable:$true] %s28
      %31 = dma.hbm_to_vmem [thread:$0]  %s1, 128, %s29, [#allocation10]
    $region9: #{tpu_custom_call.1} parent=1 // pred_fallthru
      _
    // Predicated region
    $region10: #{tpu_custom_call.1} parent=1 // pred_check
      _
    $region11: #{tpu_custom_call.1} parent=1 // pred_check_branch
      %33 = sbr.rel (0) target = $region13
    $region12: #{tpu_custom_call.1} parent=1 // pred_region
      %s35 = ssub.s32 2048, 2048
      %36 = vsyncadd [#allocation10], %s35
      %s37 = sshll.u32 [#allocation11], 4
      %s38 = int_to_ptr.vmem [resolvable:$true] %s37
      %43 = dma.hbm_to_vmem [thread:$0]  %s2, 2048, %s38, [#allocation10], 128, 128, 8
    $region13: #{tpu_custom_call.1} parent=1 // pred_fallthru
      _
    // Predicated region
    $region14: #{tpu_custom_call.1} parent=1 // pred_check
      _
    $region15: #{tpu_custom_call.1} parent=1 // pred_check_branch
      %45 = sbr.rel (0) target = $region17
    $region16: #{tpu_custom_call.1} parent=1 // pred_region
      _
    $region17: #{tpu_custom_call.1} parent=1 // pred_fallthru
      _
    // Predicated region
    $region18: #{tpu_custom_call.1} parent=1 // pred_check
      _
    $region19: #{tpu_custom_call.1} parent=1 // pred_check_branch
      %47 = sbr.rel (0) target = $region21
    $region20: #{tpu_custom_call.1} parent=1 // pred_region
      %48 = dma.done [#allocation7], 128
    $region21: #{tpu_custom_call.1} parent=1 // pred_fallthru
      _
    // Predicated region
    $region22: #{tpu_custom_call.1} parent=1 // pred_check
      _
    $region23: #{tpu_custom_call.1} parent=1 // pred_check_branch
      %50 = sbr.rel (0) target = $region25
    $region24: #{tpu_custom_call.1} parent=1 // pred_region
      %51 = dma.done [#allocation10], 128
    $region25: #{tpu_custom_call.1} parent=1 // pred_fallthru
      _
    // Predicated region
    $region26: #{tpu_custom_call.1} parent=1 // pred_check
      _
    $region27: #{tpu_custom_call.1} parent=1 // pred_check_branch
      %53 = sbr.rel (0) target = $region29
    $region28: #{tpu_custom_call.1} parent=1 // pred_region
      %54 = dma.done [#allocation10], 2048
    $region29: #{tpu_custom_call.1} parent=1 // pred_fallthru
      _
    %p55 = scmp.eq.s32.totalorder 0, 0
    // Predicated region
    $region30: #{tpu_custom_call.1} parent=1 // pred_check
      %p56 = pneg %p55
    $region31: #{tpu_custom_call.1} parent=1 // pred_check_branch
      %58 = sbr.rel (%p56) target = $region33
    $region32: #{tpu_custom_call.1} parent=1 // pred_region
      %vm59 = vcmask 0
      %60 = vst.msk [vmem:[#allocation2] sm:$0x1] %vm59, -inf
      %61 = vst.msk [vmem:[#allocation3] sm:$0x1] %vm59, 0.0
      %62 = vst.msk [vmem:[#allocation4] sm:$0x1] %vm59, 0.0
      %63 = vst.msk [vmem:[#allocation5] sm:$0x1] %vm59, 0.0
    $region33: #{tpu_custom_call.1} parent=1 // pred_fallthru
      _
    %v64 = vld [vmem:[#allocation6] sm:$0xff]
    %v65 = vld [vmem:[#allocation9] sm:$0xff]
    %v66 = vld [vmem:[#allocation2] sm:$0x1]
    %v67 = vld [vmem:[#allocation3] sm:$0x1]
    %68 = vmax.xlane.f32.xlu0 %v64
    %v69 = vpop.xlane.xlu0 %68
    %v70 = vrot.slane %v69, 4
    %v71 = vmax.f32 %v69, %v70
    %v72 = vrot.slane %v71, 2
    %v73 = vmax.f32 %v71, %v72
    %v74 = vrot.slane %v73, 1
    %v75 = vmax.f32 %v73, %v74
    %s76 = vtos %v75
    %v77 = vstv %s76
    %v78 = vmax.f32 %v66, %v77
    %v79 = vsub.f32 %v66, %v78
    %v80 = vmul.f32 %v79, 1.442695
    %v81 = vpow.pop %v80
    %v82 = vmul.f32 %v67, %v81
    %v84 = vlaneseq
    %v85 = vshrl.u32 %v84, 7
    %v86 = vsub.s32 0, %v85
    %v87 = vrot.slane %v78, %v86
    %88 = vset.pattern.permute.xlu0 0
    %89 = vperm.xlu0 %88, %v87
    %v90 = vpop.permute.xlu0 %89
    %v92 = vsub.f32 %v64, %v90
    %v93 = vmul.f32 %v92, 1.442695
    %v94 = vpow.pop %v93
    %v95 = vld [vmem:[#allocation11] sm:$0xff]
    %v96 = vld [vmem:[#allocation11 + $0x8] sm:$0xff]
    %v97 = vld [vmem:[#allocation11 + $0x10] sm:$0xff]
    %v98 = vld [vmem:[#allocation11 + $0x18] sm:$0xff]
    %v99 = vld [vmem:[#allocation11 + $0x20] sm:$0xff]
    %v100 = vld [vmem:[#allocation11 + $0x28] sm:$0xff]
    %v101 = vld [vmem:[#allocation11 + $0x30] sm:$0xff]
    %v102 = vld [vmem:[#allocation11 + $0x38] sm:$0xff]
    %v103 = vld [vmem:[#allocation11 + $0x40] sm:$0xff]
    %v104 = vld [vmem:[#allocation11 + $0x48] sm:$0xff]
    %v105 = vld [vmem:[#allocation11 + $0x50] sm:$0xff]
    %v106 = vld [vmem:[#allocation11 + $0x58] sm:$0xff]
    %v107 = vld [vmem:[#allocation11 + $0x60] sm:$0xff]
    %v108 = vld [vmem:[#allocation11 + $0x68] sm:$0xff]
    %v109 = vld [vmem:[#allocation11 + $0x70] sm:$0xff]
    %v110 = vld [vmem:[#allocation11 + $0x78] sm:$0xff]
    %111 = vmatprep.subr.mxu0 0.0
    %112 = vmatpush1.msra.mxu0 %v95
    %113 = vmatprep.subr.mxu0 0.0
    %114 = vmatpush1.msra.mxu0 %v96
    %115 = vmatprep.subr.mxu0 0.0
    %116 = vmatpush1.msra.mxu0 %v97
    %117 = vmatprep.subr.mxu0 0.0
    %118 = vmatpush1.msra.mxu0 %v98
    %119 = vmatprep.subr.mxu0 0.0
    %120 = vmatpush1.msra.mxu0 %v99
    %121 = vmatprep.subr.mxu0 0.0
    %122 = vmatpush1.msra.mxu0 %v100
    %123 = vmatprep.subr.mxu0 0.0
    %124 = vmatpush1.msra.mxu0 %v101
    %125 = vmatprep.subr.mxu0 0.0
    %126 = vmatpush1.msra.mxu0 %v102
    %127 = vmatprep.subr.mxu0 0.0
    %128 = vmatpush1.msra.mxu0 %v103
    %129 = vmatprep.subr.mxu0 0.0
    %130 = vmatpush1.msra.mxu0 %v104
    %131 = vmatprep.subr.mxu0 0.0
    %132 = vmatpush1.msra.mxu0 %v105
    %133 = vmatprep.subr.mxu0 0.0
    %134 = vmatpush1.msra.mxu0 %v106
    %135 = vmatprep.subr.mxu0 0.0
    %136 = vmatpush1.msra.mxu0 %v107
    %137 = vmatprep.subr.mxu0 0.0
    %138 = vmatpush1.msra.mxu0 %v108
    %139 = vmatprep.subr.mxu0 0.0
    %140 = vmatpush1.msra.mxu0 %v109
    %141 = vmatprep.subr.mxu0 0.0
    %142 = vmatpush1.msra.mxu0 %v110
    %143 = vmatprep.subr.mxu0 0.0
    %144 = vmatpush1.msra.mxu0 0.0
    %145 = vmatprep.subr.mxu0 0.0
    %146 = vmatpush1.msra.mxu0 0.0
    %147 = vmatprep.subr.mxu0 0.0
    %148 = vmatpush1.msra.mxu0 0.0
    %149 = vmatprep.subr.mxu0 0.0
    %150 = vmatpush1.msra.mxu0 0.0
    %151 = vmatprep.subr.mxu0 0.0
    %152 = vmatpush1.msra.mxu0 0.0
    %153 = vmatprep.subr.mxu0 0.0
    %154 = vmatpush1.msra.mxu0 0.0
    %155 = vmatprep.subr.mxu0 0.0
    %156 = vmatpush1.msra.mxu0 0.0
    %157 = vmatprep.subr.mxu0 0.0
    %158 = vmatpush1.msra.mxu0 0.0
    %159 = vmatprep.subr.mxu0 0.0
    %160 = vmatpush1.msra.mxu0 0.0
    %161 = vmatprep.subr.mxu0 0.0
    %162 = vmatpush1.msra.mxu0 0.0
    %163 = vmatprep.subr.mxu0 0.0
    %164 = vmatpush1.msra.mxu0 0.0
    %165 = vmatprep.subr.mxu0 0.0
    %166 = vmatpush1.msra.mxu0 0.0
    %167 = vmatprep.subr.mxu0 0.0
    %168 = vmatpush1.msra.mxu0 0.0
    %169 = vmatprep.subr.mxu0 0.0
    %170 = vmatpush1.msra.mxu0 0.0
    %171 = vmatprep.subr.mxu0 0.0
    %172 = vmatpush1.msra.mxu0 0.0
    %173 = vmatprep.subr.mxu0 0.0
    %174 = vmatpush1.msra.mxu0 0.0
    %175 = vmatprep.mubr.f32.mxu0 0.0
    %176 = vmatmul.mubr.f32.gmra.mrb[0].mxu0 %v94
    %v177 = vpop.f32.mrb[0].mxu0
    %v178 = vadd.f32 0.0, %v177
    %v179 = vpop.f32.mrb[0].mxu0
    %180 = vdwg.mxu0
    %v181 = vld [vmem:[%s3] sm:$0xff]
    %vm182 = vcmask 64512
    %v184 = vsel %vm182, %v181, 0
    %186 = vmatprep.subr.mxu0 0.0
    %187 = vmatpush1.msra.mxu0 %v178
    %188 = vmatprep.subr.mxu0 0.0
    %189 = vmatpush1.msra.mxu0 0.0
    %190 = vmatprep.subr.mxu0 0.0
    %191 = vmatpush1.msra.mxu0 0.0
    %192 = vmatprep.subr.mxu0 0.0
    %193 = vmatpush1.msra.mxu0 0.0
    %194 = vmatprep.subr.mxu0 0.0
    %195 = vmatpush1.msra.mxu0 0.0
    %196 = vmatprep.subr.mxu0 0.0
    %197 = vmatpush1.msra.mxu0 0.0
    %198 = vmatprep.subr.mxu0 0.0
    %199 = vmatpush1.msra.mxu0 0.0
    %200 = vmatprep.subr.mxu0 0.0
    %201 = vmatpush1.msra.mxu0 0.0
    %202 = vmatprep.subr.mxu0 0.0
    %203 = vmatpush1.msra.mxu0 0.0
    %204 = vmatprep.subr.mxu0 0.0
    %205 = vmatpush1.msra.mxu0 0.0
    %206 = vmatprep.subr.mxu0 0.0
    %207 = vmatpush1.msra.mxu0 0.0
    %208 = vmatprep.subr.mxu0 0.0
    %209 = vmatpush1.msra.mxu0 0.0
    %210 = vmatprep.subr.mxu0 0.0
    %211 = vmatpush1.msra.mxu0 0.0
    %212 = vmatprep.subr.mxu0 0.0
    %213 = vmatpush1.msra.mxu0 0.0
    %214 = vmatprep.subr.mxu0 0.0
    %215 = vmatpush1.msra.mxu0 0.0
    %216 = vmatprep.subr.mxu0 0.0
    %217 = vmatpush1.msra.mxu0 0.0
    %218 = vmatprep.subr.mxu0 0.0
    %219 = vmatpush1.msra.mxu0 0.0
    %220 = vmatprep.subr.mxu0 0.0
    %221 = vmatpush1.msra.mxu0 0.0
    %222 = vmatprep.subr.mxu0 0.0
    %223 = vmatpush1.msra.mxu0 0.0
    %224 = vmatprep.subr.mxu0 0.0
    %225 = vmatpush1.msra.mxu0 0.0
    %226 = vmatprep.subr.mxu0 0.0
    %227 = vmatpush1.msra.mxu0 0.0
    %228 = vmatprep.subr.mxu0 0.0
    %229 = vmatpush1.msra.mxu0 0.0
    %230 = vmatprep.subr.mxu0 0.0
    %231 = vmatpush1.msra.mxu0 0.0
    %232 = vmatprep.subr.mxu0 0.0
    %233 = vmatpush1.msra.mxu0 0.0
    %234 = vmatprep.subr.mxu0 0.0
    %235 = vmatpush1.msra.mxu0 0.0
    %236 = vmatprep.subr.mxu0 0.0
    %237 = vmatpush1.msra.mxu0 0.0
    %238 = vmatprep.subr.mxu0 0.0
    %239 = vmatpush1.msra.mxu0 0.0
    %240 = vmatprep.subr.mxu0 0.0
    %241 = vmatpush1.msra.mxu0 0.0
    %242 = vmatprep.subr.mxu0 0.0
    %243 = vmatpush1.msra.mxu0 0.0
    %244 = vmatprep.subr.mxu0 0.0
    %245 = vmatpush1.msra.mxu0 0.0
    %246 = vmatprep.subr.mxu0 0.0
    %247 = vmatpush1.msra.mxu0 0.0
    %248 = vmatprep.subr.mxu0 0.0
    %249 = vmatpush1.msra.mxu0 0.0
    %250 = vmatprep.mubr.f32.mxu0 0.0
    %251 = vmatmul.mubr.f32.gmra.mrb[0].mxu0 %v184
    %v252 = vpop.f32.mrb[0].mxu0
    %v253 = vadd.f32 0.0, %v252
    %v254 = vpop.f32.mrb[0].mxu0
    %255 = vdwg.mxu0
    %v257 = vlaneseq
    %v258 = vshrl.u32 %v257, 7
    %v259 = vsub.s32 0, %v258
    %v260 = vrot.slane %v82, %v259
    %263 = vrot.lane.b32.xlu0 %v253, 1
    %v264 = vpop.permute.xlu0 %263
    %v266 = vadd.f32 %v260, %v264
    %268 = vset.pattern.permute.xlu0 0
    %269 = vperm.xlu0 %268, %v266
    %v270 = vpop.permute.xlu0 %269
    %v272 = vadd.f32 %v270, %v178
    %v273 = vlog2.pop %v272
    %v274 = vmul.f32 %v273, 0.6931472
    %v275 = vadd.f32 %v274, %v90
    %v276 = vsub.f32 %v64, %v275
    %v277 = vld [vmem:[#allocation4] sm:$0x1]
    %vm278 = vcmp.gt.f32.partialorder %v65, 0.0
    %v279 = vsel %vm278, %v276, 0.0
    %280 = vadd.xlane.f32.xlu0 %v279
    %v281 = vpop.xlane.xlu0 %280
    %v282 = vrot.slane %v281, 4
    %v283 = vadd.f32 %v281, %v282
    %v284 = vrot.slane %v283, 2
    %v285 = vadd.f32 %v283, %v284
    %v286 = vrot.slane %v285, 1
    %v287 = vadd.f32 %v285, %v286
    %s288 = vtos %v287
    %v289 = vstv %s288
    %v290 = vadd.f32 %v277, %v289
    %vm291 = vcmask 0
    %292 = vst.msk [vmem:[#allocation4] sm:$0x1] %vm291, %v290
    %v293 = vld [vmem:[#allocation5] sm:$0x1]
    %294 = vadd.xlane.f32.xlu0 %v65
    %v295 = vpop.xlane.xlu0 %294
    %v296 = vrot.slane %v295, 4
    %v297 = vadd.f32 %v295, %v296
    %v298 = vrot.slane %v297, 2
    %v299 = vadd.f32 %v297, %v298
    %v300 = vrot.slane %v299, 1
    %v301 = vadd.f32 %v299, %v300
    %s302 = vtos %v301
    %v303 = vstv %s302
    %v304 = vadd.f32 %v293, %v303
    %305 = vst.msk [vmem:[#allocation5] sm:$0x1] %vm291, %v304
    %307 = vrot.lane.b32.xlu0 %v178, 1
    %v308 = vpop.permute.xlu0 %307
    %vm310 = vcmask 7168
    %v311 = vsel %vm310, %v308, 0.0
    %312 = vadd.xlane.f32.xlu0 %v311
    %v313 = vpop.xlane.xlu0 %312
    %v314 = vrot.slane %v313, 4
    %v315 = vadd.f32 %v313, %v314
    %v316 = vrot.slane %v315, 2
    %v317 = vadd.f32 %v315, %v316
    %v318 = vrot.slane %v317, 1
    %v319 = vadd.f32 %v317, %v318
    %s320 = vtos %v319
    %v321 = vstv %s320
    %v322 = vadd.f32 %v82, %v321
    %323 = vst.msk [vmem:[#allocation3] sm:$0x1] %vm291, %v322
    %324 = vst.msk [vmem:[#allocation2] sm:$0x1] %vm291, %v78
    // Predicated region
    $region34: #{tpu_custom_call.1} parent=1 // pred_check
      %p325 = pneg %p55
    $region35: #{tpu_custom_call.1} parent=1 // pred_check_branch
      %327 = sbr.rel (%p325) target = $region37
    $region36: #{tpu_custom_call.1} parent=1 // pred_region
      %v328 = vld [vmem:[#allocation4] sm:$0x1]
      %v329 = vld [vmem:[#allocation5] sm:$0x1]
      %v330 = vrcp.pop %v329
      %v331 = vmul.f32 %v328, %v330
      %v332 = vsub.f32 0.0, %v331
      %333 = vst.msk [vmem:[#allocation12] sm:$0x1] %vm291, %v332
    $region37: #{tpu_custom_call.1} parent=1 // pred_fallthru
      _
    // Predicated region
    $region38: #{tpu_custom_call.1} parent=1 // pred_check
      _
    $region39: #{tpu_custom_call.1} parent=1 // pred_check_branch
      %335 = sbr.rel (0) target = $region41
    $region40: #{tpu_custom_call.1} parent=1 // pred_region
      %s337 = ssub.s32 16, 16
      %338 = vsyncadd [#allocation8], %s337
      %s340 = sshll.u32 [#allocation12], 4
      %s341 = int_to_ptr.vmem [resolvable:$true] %s340
      %343 = dma.vmem_to_hbm [thread:$0]  %s341, 16, %s4, [#allocation8]
    $region41: #{tpu_custom_call.1} parent=1 // pred_fallthru
      _
    // Predicated region
    $region42: #{tpu_custom_call.1} parent=1 // pred_check
      _
    $region43: #{tpu_custom_call.1} parent=1 // pred_check_branch
      %345 = sbr.rel (0) target = $region45
    $region44: #{tpu_custom_call.1} parent=1 // pred_region
      %346 = dma.done [#allocation8], 16
    $region45: #{tpu_custom_call.1} parent=1 // pred_fallthru
      _
    %347 = vsyncpa [#allocation7], 1
    %348 = vsyncpa [#allocation10], 1
    %349 = vsyncpa [#allocation8], 1

</llo_original>
